<compile_context>
chip_gen: v6e
topology: v6e:2x2x1
jax: 0.10.0
libtpu: 0.0.40
codegen_flags: <defaults>
</compile_context>

<pallas_src>
import functools

import jax
import jax.numpy as jnp
from jax.experimental import pallas as pl
from jax.experimental.pallas import tpu as pltpu

# Scaled-down analogue of the original dinov2_models table (synthetic hidden size).
dinov2_models = {"demo": ["synthetic/dinov2-demo", 32]}


def _bilinear_weight_matrix(out_size: int, in_size: int) -> jnp.ndarray:
    """Rows of interpolation weights reproducing F.interpolate(mode='bilinear',
    align_corners=False) along one axis: out = R @ in, R is (out_size, in_size).
    Each row sums to exactly 1 (so a channel bias commutes through the resize)."""
    scale = in_size / out_size
    dst = jnp.arange(out_size, dtype=jnp.float32)
    src = (dst + 0.5) * scale - 0.5
    src = jnp.maximum(src, 0.0)  # PyTorch clamps negative source index for linear
    i0 = jnp.clip(jnp.floor(src).astype(jnp.int32), 0, in_size - 1)
    i1 = jnp.minimum(i0 + 1, in_size - 1)
    lam1 = src - i0.astype(jnp.float32)
    lam0 = 1.0 - lam1
    rows = jnp.arange(out_size)
    r = jnp.zeros((out_size, in_size), jnp.float32)
    r = r.at[rows, i0].add(lam0)
    r = r.at[rows, i1].add(lam1)
    return r


def _adapter_kernel(x_ref, r_ref, wt_ref, b_ref, o_ref, *, batch_block):
    # x_ref  : (batch_block, HW_in, C_in)   channels-last, spatial flattened (bf16)
    # r_ref  : (HW_out, HW_in)              bilinear resize operator (bf16)
    # wt_ref : (C_in, C_out)                transposed 1x1-conv weight (bf16)
    # b_ref  : (1, C_out)                   conv bias (f32 epilogue)
    # o_ref  : (batch_block, HW_out, C_out) lane-dense output (C_out on lanes)
    #
    # Grid-invariant operands are loaded once per step (they stay VMEM-resident
    # across the whole grid since their index_map is constant).
    r = r_ref[...]
    wt = wt_ref[...]
    bias = b_ref[...]
    for i in range(batch_block):  # static, small (1 or N/2)
        # Bilinear downsample first: (HW_out, HW_in) @ (HW_in, C_in) -> (HW_out, C_in)
        # Deep K = HW_in contraction on the MXU, narrow C_in intermediate.
        y = jnp.dot(r, x_ref[i], preferred_element_type=jnp.float32)
        # 1x1 conv == channel matmul: (HW_out, C_in) @ (C_in, C_out) -> (HW_out, C_out)
        z = jnp.dot(y.astype(wt.dtype), wt, preferred_element_type=jnp.float32)
        # Bias commutes through the resize (rows of r sum to 1); add once, in f32.
        o_ref[i] = (z + bias).astype(o_ref.dtype)


class HRNetDINO2Adapter:
    """JAX/Pallas port of the PyTorch HRNetDINO2Adapter forward pass."""

    def __init__(self, key, dinov2="demo",
                 input_shape=(8, 16, 16), target_shape=(32, 7, 5),
                 compute_dtype=jnp.bfloat16):
        hidden_size = dinov2_models[dinov2][1]
        self.input_channels, self.input_height, self.input_width = input_shape
        self.target_channels, self.target_height, self.target_width = target_shape
        assert hidden_size == self.target_channels
        self.compute_dtype = compute_dtype

        kw, kb = jax.random.split(key)
        # Synthetic parameters (PyTorch shape: (C_out, C_in, 1, 1) + (C_out,)).
        self.weight = (jax.random.normal(kw, (hidden_size, self.input_channels),
                                         jnp.float32) * 0.05)
        self.bias = jax.random.normal(kb, (hidden_size,), jnp.float32) * 0.05

        # Bilinear resize operator applied BEFORE the channel expansion.
        rh = _bilinear_weight_matrix(self.target_height, self.input_height)
        rw = _bilinear_weight_matrix(self.target_width, self.input_width)
        # kron(Rh, Rw)[p*W_out+q, h*W_in+w] = Rh[p,h] * Rw[q,w]  (row-major flatten).
        # TODO(synk): at production DINOv2/HRNet sizes (HW_in ~ 41k, HW_out ~ 3.3k)
        # replace the dense kron with a separable two-pass (Rh then Rw) resize with
        # spatial tiling; the dense kron operator is O(HW_in*HW_out) VMEM.
        self.resize = jnp.kron(rh, rw).astype(compute_dtype)      # (HW_out, HW_in)
        self.weight_t = self.weight.T.astype(compute_dtype)       # (C_in, C_out)
        self.bias2 = self.bias.reshape(1, hidden_size)            # f32 epilogue

    def __call__(self, x):
        n, c_in, h_in, w_in = x.shape
        assert (c_in, h_in, w_in) == (self.input_channels, self.input_height,
                                      self.input_width)
        c_out = self.target_channels
        hw_in = h_in * w_in
        hw_out = self.target_height * self.target_width

        # Layout plumbing only: channels-last, spatial flattened, bf16 matmul operands.
        x_cl = jnp.transpose(x, (0, 2, 3, 1)).reshape(n, hw_in, c_in)
        x_cl = x_cl.astype(self.compute_dtype)

        # Batch blocking: keep >=2 parallel grid steps (both v7x TensorCores busy)
        # while giving each step as much work as possible to amortize the
        # ~0.35us per-step overhead.
        if n >= 4 and n % 2 == 0:
            batch_block = n // 2
        else:
            batch_block = 1
        assert n % batch_block == 0
        grid = (n // batch_block,)

        esize = jnp.dtype(self.compute_dtype).itemsize
        flops = 2 * n * hw_out * (hw_in * c_in + c_in * c_out)
        bytes_accessed = (n * hw_in * c_in * esize
                          + hw_out * hw_in * esize
                          + c_in * c_out * esize
                          + c_out * 4
                          + n * hw_out * c_out * jnp.dtype(x.dtype).itemsize)

        out_flat = pl.pallas_call(
            functools.partial(_adapter_kernel, batch_block=batch_block),
            out_shape=jax.ShapeDtypeStruct((n, hw_out, c_out), x.dtype),
            grid_spec=pltpu.PrefetchScalarGridSpec(
                num_scalar_prefetch=0,
                grid=grid,
                in_specs=[
                    pl.BlockSpec((batch_block, hw_in, c_in), lambda g: (g, 0, 0)),
                    pl.BlockSpec((hw_out, hw_in), lambda g: (0, 0)),   # grid-invariant
                    pl.BlockSpec((c_in, c_out), lambda g: (0, 0)),     # grid-invariant
                    pl.BlockSpec((1, c_out), lambda g: (0, 0)),        # grid-invariant
                ],
                out_specs=pl.BlockSpec((batch_block, hw_out, c_out),
                                       lambda g: (g, 0, 0)),
            ),
            compiler_params=pltpu.CompilerParams(
                dimension_semantics=("parallel",)),
            cost_estimate=pl.CostEstimate(flops=flops, transcendentals=0,
                                          bytes_accessed=bytes_accessed),
        )(x_cl, self.resize, self.weight_t, self.bias2)

        # Back to NCHW (layout plumbing in the wrapper; kernel output is
        # channels-on-lanes, a multiple of 128 at real DINOv2 hidden sizes).
        out = jnp.transpose(out_flat, (0, 2, 1)).reshape(
            n, c_out, self.target_height, self.target_width)
        return out

    def reference(self, x):
        """Pure-JAX f32 reference, same op order as the PyTorch module."""
        rh = _bilinear_weight_matrix(self.target_height, self.input_height)
        rw = _bilinear_weight_matrix(self.target_width, self.input_width)
        y = jnp.einsum("oc,nchw->nohw", self.weight, x) + self.bias[None, :, None, None]
        y = jnp.einsum("ph,nohw->nopw", rh, y)
        y = jnp.einsum("qw,nopw->nopq", rw, y)
        return y


if __name__ == "__main__":
    key = jax.random.PRNGKey(0)
    k_param, k_x = jax.random.split(key)

    # Small shapes consistent with the module's forward:
    #   input  (N=2, C_in=8, H_in=16, W_in=16)
    #   output (N=2, C_out=32, H_out=7, W_out=5)  (channel expand + spatial downsample)
    adapter = HRNetDINO2Adapter(k_param, dinov2="demo",
                                input_shape=(8, 16, 16), target_shape=(32, 7, 5))

    x = jax.random.normal(k_x, (2, 8, 16, 16), jnp.float32)

    out = jax.block_until_ready(adapter(x))

    assert out.shape == (2, 32, 7, 5), out.shape
    ref = adapter.reference(x)
    max_err = float(jnp.max(jnp.abs(out - ref)))
    # bf16 matmul operands with f32 accumulation -> relaxed tolerance.
    assert jnp.allclose(out, ref, atol=2e-2, rtol=2e-2), max_err

    print("KERNEL_OK")
</pallas_src>

<mosaic_0001>
module attributes {stable_mosaic.version = 11 : i64} {
  func.func @_adapter_kernel(%arg0: i32, %arg1: memref<1x256x8xbf16, #tpu.memory_space<vmem>>, %arg2: memref<35x256xbf16, #tpu.memory_space<vmem>>, %arg3: memref<8x32xbf16, #tpu.memory_space<vmem>>, %arg4: memref<1x32xf32, #tpu.memory_space<vmem>>, %arg5: memref<1x35x32xf32, #tpu.memory_space<vmem>>) attributes {dimension_semantics = [#tpu.dimension_semantics<parallel>], iteration_bounds = array<i64: 2>, scalar_prefetch = 0 : i64, scratch_operands = 0 : i64, tpu.core_type = #tpu.core_type<tc>, window_params = [{transform_indices = @transform_0, window_bounds = array<i64: 1, 256, 8>}, {pipeline_mode = #tpu.pipeline_mode<synchronous>, transform_indices = @transform_1, window_bounds = array<i64: 35, 256>}, {pipeline_mode = #tpu.pipeline_mode<synchronous>, transform_indices = @transform_2, window_bounds = array<i64: 8, 32>}, {pipeline_mode = #tpu.pipeline_mode<synchronous>, transform_indices = @transform_3, window_bounds = array<i64: 1, 32>}, {transform_indices = @transform_4, window_bounds = array<i64: 1, 35, 32>}]} {
    %c0 = arith.constant 0 : index
    %c0_0 = arith.constant 0 : index
    %0 = vector.load %arg2[%c0, %c0_0] : memref<35x256xbf16, #tpu.memory_space<vmem>>, vector<35x256xbf16>
    %c0_1 = arith.constant 0 : index
    %c0_2 = arith.constant 0 : index
    %1 = vector.load %arg3[%c0_1, %c0_2] : memref<8x32xbf16, #tpu.memory_space<vmem>>, vector<8x32xbf16>
    %c0_3 = arith.constant 0 : index
    %c0_4 = arith.constant 0 : index
    %2 = vector.load %arg4[%c0_3, %c0_4] : memref<1x32xf32, #tpu.memory_space<vmem>>, vector<1x32xf32>
    %c0_5 = arith.constant 0 : index
    %c0_6 = arith.constant 0 : index
    %c0_7 = arith.constant 0 : index
    %3 = vector.load %arg1[%c0_5, %c0_6, %c0_7] : memref<1x256x8xbf16, #tpu.memory_space<vmem>>, vector<1x256x8xbf16>
    %4 = vector.shape_cast %3 : vector<1x256x8xbf16> to vector<256x8xbf16>
    %cst = arith.constant dense<0.000000e+00> : vector<35x8xf32>
    %5 = tpu.matmul %0, %4, %cst {dimension_numbers = #tpu.dot_dimension_numbers<[1], [0], [0], [1], [0, 0, 1, 1], [], []>} : vector<35x256xbf16>, vector<256x8xbf16>, vector<35x8xf32> -> vector<35x8xf32>
    %6 = arith.truncf %5 : vector<35x8xf32> to vector<35x8xbf16>
    %cst_8 = arith.constant dense<0.000000e+00> : vector<35x32xf32>
    %7 = tpu.matmul %6, %1, %cst_8 {dimension_numbers = #tpu.dot_dimension_numbers<[1], [0], [0], [1], [0, 0, 1, 1], [], []>} : vector<35x8xbf16>, vector<8x32xbf16>, vector<35x32xf32> -> vector<35x32xf32>
    %8 = vector.broadcast %2 : vector<1x32xf32> to vector<35x32xf32>
    %9 = arith.addf %7, %8 : vector<35x32xf32>
    %c0_9 = arith.constant 0 : index
    %c0_10 = arith.constant 0 : index
    %c0_11 = arith.constant 0 : index
    %10 = vector.load %arg5[%c0_9, %c0_10, %c0_11] : memref<1x35x32xf32, #tpu.memory_space<vmem>>, vector<1x35x32xf32>
    %11 = vector.shape_cast %10 : vector<1x35x32xf32> to vector<35x32xf32>
    %12 = vector.shape_cast %9 : vector<35x32xf32> to vector<1x35x32xf32>
    tpu.vector_store %arg5[%c0_9, %c0_10, %c0_11], %12 {strides = array<i32>} : memref<1x35x32xf32, #tpu.memory_space<vmem>>, vector<1x35x32xf32>,
    return
  }
  func.func @transform_0(%arg0: i32) -> (i32, i32, i32) {
    %c0_i32 = arith.constant 0 : i32
    %c0_i32_0 = arith.constant 0 : i32
    %c0_i32_1 = arith.constant 0 : i32
    return %arg0, %c0_i32, %c0_i32_0 : i32, i32, i32
  }
  func.func @transform_1(%arg0: i32) -> (i32, i32) {
    %c0_i32 = arith.constant 0 : i32
    %c0_i32_0 = arith.constant 0 : i32
    %c0_i32_1 = arith.constant 0 : i32
    return %c0_i32, %c0_i32_0 : i32, i32
  }
  func.func @transform_2(%arg0: i32) -> (i32, i32) {
    %c0_i32 = arith.constant 0 : i32
    %c0_i32_0 = arith.constant 0 : i32
    %c0_i32_1 = arith.constant 0 : i32
    return %c0_i32, %c0_i32_0 : i32, i32
  }
  func.func @transform_3(%arg0: i32) -> (i32, i32) {
    %c0_i32 = arith.constant 0 : i32
    %c0_i32_0 = arith.constant 0 : i32
    %c0_i32_1 = arith.constant 0 : i32
    return %c0_i32, %c0_i32_0 : i32, i32
  }
  func.func @transform_4(%arg0: i32) -> (i32, i32, i32) {
    %c0_i32 = arith.constant 0 : i32
    %c0_i32_0 = arith.constant 0 : i32
    %c0_i32_1 = arith.constant 0 : i32
    return %arg0, %c0_i32, %c0_i32_0 : i32, i32, i32
  }
}

</mosaic_0001>

<llo_original>
// kernel: tpu_custom_call.1
$region0: #{tpu_custom_call.1}
  #allocation0 [shape = 'u32[]', space=smem, size = 0x4, offset = 0x4, fixed_abs, tag = 'smem constant byte address 0x4 - core index']
  #allocation1 [shape = 'u32[144,128]{1,0:T(1,128)}', space=vmem, size = 0x12000, scoped, tag = 'internal scratch']
  %s0 = inlined_call_operand.vmem [shape: bf16[2,256,8], index: 0, kind: input, shape index: {}]
  %s1 = inlined_call_operand.vmem [shape: bf16[35,256], index: 1, kind: input, shape index: {}]
  %s2 = inlined_call_operand.vmem [shape: bf16[8,32], index: 2, kind: input, shape index: {}]
  %s3 = inlined_call_operand.vmem [shape: f32[1,32], index: 3, kind: input, shape index: {}]
  %s4 = inlined_call_operand.vmem [shape: f32[2,35,32], index: 4, kind: output, shape index: {}]
  %s5 = sld [smem:[#allocation0]]
  $region49: #{tpu_custom_call.1} parent=0
    _
  %s7 = ssub.s32 1, %s5
  %s8 = scalar_select 0, %s7, %s5
  loop: start=0, step=1, limit=4
  $region2: #{tpu_custom_call.1} parent=0 // loop_pre_header
    _
  $region3: #{tpu_custom_call.1} parent=0 // loop_header
    %s10 = sphi 0, %s14
    %p11 = scmp.ge.s32.totalorder %s10, 4
    %s20 = sphi 0, %s22
    %s23 = sphi 0, %s20
    %s24 = sphi 0, %s23
    %s40 = sphi 0, %s24
    %s44 = sphi 0, %s44
    %s46 = sphi 0, %s44
    %s47 = sphi 0, %s46
    %s61 = sphi 0, %s47
    %s65 = sphi 0, %s65
    %s67 = sphi 0, %s65
    %s68 = sphi 0, %s67
    %s82 = sphi 0, %s68
    %s86 = sphi 0, %s86
    %s88 = sphi 0, %s86
    %s89 = sphi 0, %s88
    %s103 = sphi 0, %s89
    %s109 = sphi 0, %s111
    %s112 = sphi 0, %s109
    %s113 = sphi 0, %s112
    %s129 = sphi 0, %s113
  $region4: #{tpu_custom_call.1} parent=0 // loop_header_branch
    %13 = sbr.rel (%p11) target = $region8
  $region5: #{tpu_custom_call.1} parent=0 // loop_body
    %s15 = ssub.s32 %s10, 1
    %s16 = ssub.s32 %s10, 2
    %s17 = sadd.s32 %s10, 1
    %s18 = ssub.s32 %s10, %s17
    %p19 = scmp.eq.s32.totalorder %s18, 0
    %s21 = sadd.s32 %s20, 1
    %s22 = scalar_select %p19, %s20, %s21
    %p25 = pneg %p19
    %p26 = scmp.eq.s32.totalorder %s10, 1
    %p27 = por %p25, %p26
    %p28 = scmp.ne.s32.totalorder %s20, %s23
    %p29 = scmp.eq.s32.totalorder %s10, 0
    %p30 = por %p28, %p29
    %p31 = scmp.ne.s32.totalorder %s20, %s23
    %p32 = scmp.eq.s32.totalorder %s15, 1
    %p33 = por %p31, %p32
    %p34 = scmp.ne.s32.totalorder %s23, %s24
    %p35 = scmp.eq.s32.totalorder %s15, 0
    %p36 = por %p34, %p35
    %p37 = scmp.ne.s32.totalorder %s23, %s24
    %p38 = scmp.eq.s32.totalorder %s16, 1
    %p39 = por %p37, %p38
    %p41 = scmp.ne.s32.totalorder %s24, %s40
    %p42 = scmp.eq.s32.totalorder %s16, 0
    %p43 = por %p41, %p42
    %s45 = sadd.s32 %s44, 1
    %p48 = scmp.eq.s32.totalorder %s10, 1
    %p49 = scmp.ne.s32.totalorder %s44, %s46
    %p50 = scmp.eq.s32.totalorder %s10, 0
    %p51 = por %p49, %p50
    %p52 = scmp.ne.s32.totalorder %s44, %s46
    %p53 = scmp.eq.s32.totalorder %s15, 1
    %p54 = por %p52, %p53
    %p55 = scmp.ne.s32.totalorder %s46, %s47
    %p56 = scmp.eq.s32.totalorder %s15, 0
    %p57 = por %p55, %p56
    %p58 = scmp.ne.s32.totalorder %s46, %s47
    %p59 = scmp.eq.s32.totalorder %s16, 1
    %p60 = por %p58, %p59
    %p62 = scmp.ne.s32.totalorder %s47, %s61
    %p63 = scmp.eq.s32.totalorder %s16, 0
    %p64 = por %p62, %p63
    %s66 = sadd.s32 %s65, 1
    %p69 = scmp.eq.s32.totalorder %s10, 1
    %p70 = scmp.ne.s32.totalorder %s65, %s67
    %p71 = scmp.eq.s32.totalorder %s10, 0
    %p72 = por %p70, %p71
    %p73 = scmp.ne.s32.totalorder %s65, %s67
    %p74 = scmp.eq.s32.totalorder %s15, 1
    %p75 = por %p73, %p74
    %p76 = scmp.ne.s32.totalorder %s67, %s68
    %p77 = scmp.eq.s32.totalorder %s15, 0
    %p78 = por %p76, %p77
    %p79 = scmp.ne.s32.totalorder %s67, %s68
    %p80 = scmp.eq.s32.totalorder %s16, 1
    %p81 = por %p79, %p80
    %p83 = scmp.ne.s32.totalorder %s68, %s82
    %p84 = scmp.eq.s32.totalorder %s16, 0
    %p85 = por %p83, %p84
    %s87 = sadd.s32 %s86, 1
    %p90 = scmp.eq.s32.totalorder %s10, 1
    %p91 = scmp.ne.s32.totalorder %s86, %s88
    %p92 = scmp.eq.s32.totalorder %s10, 0
    %p93 = por %p91, %p92
    %p94 = scmp.ne.s32.totalorder %s86, %s88
    %p95 = scmp.eq.s32.totalorder %s15, 1
    %p96 = por %p94, %p95
    %p97 = scmp.ne.s32.totalorder %s88, %s89
    %p98 = scmp.eq.s32.totalorder %s15, 0
    %p99 = por %p97, %p98
    %p100 = scmp.ne.s32.totalorder %s88, %s89
    %p101 = scmp.eq.s32.totalorder %s16, 1
    %p102 = por %p100, %p101
    %p104 = scmp.ne.s32.totalorder %s89, %s103
    %p105 = scmp.eq.s32.totalorder %s16, 0
    %p106 = por %p104, %p105
    %s107 = ssub.s32 %s10, %s17
    %p108 = scmp.eq.s32.totalorder %s107, 0
    %s110 = sadd.s32 %s109, 1
    %s111 = scalar_select %p108, %s109, %s110
    %p114 = pneg %p108
    %p115 = scmp.eq.s32.totalorder %s10, 1
    %p116 = por %p114, %p115
    %p117 = scmp.ne.s32.totalorder %s109, %s112
    %p118 = scmp.eq.s32.totalorder %s10, 0
    %p119 = por %p117, %p118
    %p120 = scmp.ne.s32.totalorder %s109, %s112
    %p121 = scmp.eq.s32.totalorder %s15, 1
    %p122 = por %p120, %p121
    %p123 = scmp.ne.s32.totalorder %s112, %s113
    %p124 = scmp.eq.s32.totalorder %s15, 0
    %p125 = por %p123, %p124
    %p126 = scmp.ne.s32.totalorder %s112, %s113
    %p127 = scmp.eq.s32.totalorder %s16, 1
    %p128 = por %p126, %p127
    %p130 = scmp.ne.s32.totalorder %s113, %s129
    %p131 = scmp.eq.s32.totalorder %s16, 0
    %p132 = por %p130, %p131
    %p133 = scmp.le.s32.totalorder 1, %s10
    %p134 = scmp.lt.s32.totalorder %s10, 3
    %p135 = pnand %p133, %p134
    %p136 = pneg %p135
    // Predicated region
    $region9: #{tpu_custom_call.1} parent=5 // pred_check
      _
    $region10: #{tpu_custom_call.1} parent=5 // pred_check_branch
      %138 = sbr.rel (%p135) target = $region12
    $region11: #{tpu_custom_call.1} parent=5 // pred_region
      %s139 = ssub.s32 %s10, 1
      // Predicated region
      $region13: #{tpu_custom_call.1} parent=11 // pred_check
        %p140 = pneg %p57
      $region14: #{tpu_custom_call.1} parent=11 // pred_check_branch
        %142 = sbr.rel (%p140) target = $region16
      $region15: #{tpu_custom_call.1} parent=11 // pred_region
        _
      $region16: #{tpu_custom_call.1} parent=11 // pred_fallthru
        _
      // Predicated region
      $region17: #{tpu_custom_call.1} parent=11 // pred_check
        %p143 = pneg %p78
      $region18: #{tpu_custom_call.1} parent=11 // pred_check_branch
        %145 = sbr.rel (%p143) target = $region20
      $region19: #{tpu_custom_call.1} parent=11 // pred_region
        _
      $region20: #{tpu_custom_call.1} parent=11 // pred_fallthru
        _
      // Predicated region
      $region21: #{tpu_custom_call.1} parent=11 // pred_check
        %p146 = pneg %p99
      $region22: #{tpu_custom_call.1} parent=11 // pred_check_branch
        %148 = sbr.rel (%p146) target = $region24
      $region23: #{tpu_custom_call.1} parent=11 // pred_region
        _
      $region24: #{tpu_custom_call.1} parent=11 // pred_fallthru
        _
    $region12: #{tpu_custom_call.1} parent=5 // pred_fallthru
      _
    %p149 = scmp.lt.s32.totalorder %s10, 2
    // Predicated region
    $region25: #{tpu_custom_call.1} parent=5 // pred_check
      %p150 = pneg %p149
    $region26: #{tpu_custom_call.1} parent=5 // pred_check_branch
      %152 = sbr.rel (%p150) target = $region28
    $region27: #{tpu_custom_call.1} parent=5 // pred_region
      // Predicated region
      $region29: #{tpu_custom_call.1} parent=27 // pred_check
        %p153 = pneg %p30
      $region30: #{tpu_custom_call.1} parent=27 // pred_check_branch
        %155 = sbr.rel (%p153) target = $region32
      $region31: #{tpu_custom_call.1} parent=27 // pred_region
        %p156 = scmp.lt.s32.totalorder %s10, 1
        %s157 = scalar_select %p156, %s10, 1
        %s158 = smul.addr %s157, 32
        %s159 = smul.addr %s158, 4
        %s160 = scalar_lea.vmem %s0, %s159
      $region32: #{tpu_custom_call.1} parent=27 // pred_fallthru
        _
    $region28: #{tpu_custom_call.1} parent=5 // pred_fallthru
      _
    %p161 = scmp.le.s32.totalorder 1, %s10
    %p162 = scmp.lt.s32.totalorder %s10, 3
    %p163 = pnand %p161, %p162
    %p164 = pneg %p163
    // Predicated region
    $region33: #{tpu_custom_call.1} parent=5 // pred_check
      _
    $region34: #{tpu_custom_call.1} parent=5 // pred_check_branch
      %166 = sbr.rel (%p163) target = $region36
    $region35: #{tpu_custom_call.1} parent=5 // pred_region
      %s167 = ssub.s32 %s10, 1
      %p168 = scmp.lt.s32.totalorder %s15, 1
      %s169 = scalar_select %p168, %s15, 1
      %s170 = smul.addr %s169, 32
      %s171 = smul.addr %s170, 4
      %s172 = scalar_lea.vmem %s0, %s171
      %p173 = pneg %p36
      %p174 = pneg %p33
      %p175 = pneg %p57
      %p176 = pneg %p54
      %p177 = pneg %p78
      %p178 = pneg %p75
      %p179 = pneg %p99
      %p180 = pneg %p96
      %p181 = pneg %p125
      %p182 = pneg %p122
      %p183 = scmp.lt.s32.totalorder %s15, 1
      %s184 = scalar_select %p183, %s15, 1
      %s185 = smul.addr %s184, 5
      %s186 = smul.addr %s185, 8
      %s187 = scalar_lea.vmem %s4, %s186
      %p188 = scmp.lt.s32.totalorder %s15, 1
      %s189 = scalar_select %p188, %s15, 1
      %s190 = smul.addr %s189, 32
      %s191 = smul.addr %s190, 4
      %s192 = scalar_lea.vmem %s0, %s191
      %p193 = scmp.lt.s32.totalorder %s15, 1
      %s194 = scalar_select %p193, %s15, 1
      %s195 = smul.addr %s194, 5
      %s196 = smul.addr %s195, 8
      %s197 = scalar_lea.vmem %s4, %s196
      %v199 = vld [vmem:[%s1] sm:$0xff]
      %v200 = vld [vmem:[%s1 + $0x8] sm:$0xff]
      %v201 = vld [vmem:[%s1 + $0x10] sm:$0xff]
      %v202 = vld [vmem:[%s1 + $0x18] sm:$0xff]
      %v203 = vld [vmem:[%s1 + $0x20] sm:$0x33]
      %v204 = vld [vmem:[%s2] sm:$0xf]
      %v205 = vld [vmem:[%s3] sm:$0x1]
      %v206 = vld [vmem:[%s192] sm:$0xf]
      %v207 = vld [vmem:[%s192 + $0x4] sm:$0xf]
      %v208 = vld [vmem:[%s192 + $0x8] sm:$0xf]
      %v209 = vld [vmem:[%s192 + $0xc] sm:$0xf]
      %v210 = vld [vmem:[%s192 + $0x10] sm:$0xf]
      %v211 = vld [vmem:[%s192 + $0x14] sm:$0xf]
      %v212 = vld [vmem:[%s192 + $0x18] sm:$0xf]
      %v213 = vld [vmem:[%s192 + $0x1c] sm:$0xf]
      %v214 = vld [vmem:[%s192 + $0x20] sm:$0xf]
      %v215 = vld [vmem:[%s192 + $0x24] sm:$0xf]
      %v216 = vld [vmem:[%s192 + $0x28] sm:$0xf]
      %v217 = vld [vmem:[%s192 + $0x2c] sm:$0xf]
      %v218 = vld [vmem:[%s192 + $0x30] sm:$0xf]
      %v219 = vld [vmem:[%s192 + $0x34] sm:$0xf]
      %v220 = vld [vmem:[%s192 + $0x38] sm:$0xf]
      %v221 = vld [vmem:[%s192 + $0x3c] sm:$0xf]
      %v222 = vld [vmem:[%s192 + $0x40] sm:$0xf]
      %v223 = vld [vmem:[%s192 + $0x44] sm:$0xf]
      %v224 = vld [vmem:[%s192 + $0x48] sm:$0xf]
      %v225 = vld [vmem:[%s192 + $0x4c] sm:$0xf]
      %v226 = vld [vmem:[%s192 + $0x50] sm:$0xf]
      %v227 = vld [vmem:[%s192 + $0x54] sm:$0xf]
      %v228 = vld [vmem:[%s192 + $0x58] sm:$0xf]
      %v229 = vld [vmem:[%s192 + $0x5c] sm:$0xf]
      %v230 = vld [vmem:[%s192 + $0x60] sm:$0xf]
      %v231 = vld [vmem:[%s192 + $0x64] sm:$0xf]
      %v232 = vld [vmem:[%s192 + $0x68] sm:$0xf]
      %v233 = vld [vmem:[%s192 + $0x6c] sm:$0xf]
      %v234 = vld [vmem:[%s192 + $0x70] sm:$0xf]
      %v235 = vld [vmem:[%s192 + $0x74] sm:$0xf]
      %v236 = vld [vmem:[%s192 + $0x78] sm:$0xf]
      %v237 = vld [vmem:[%s192 + $0x7c] sm:$0xf]
      %v243 = vunpack.c.l.b16 %v199
      %v244 = vunpack.c.h.b16 %v199
      %v245 = vunpack.c.l.b16 %v200
      %v246 = vunpack.c.h.b16 %v200
      %v247 = vunpack.c.l.b16 %v201
      %v248 = vunpack.c.h.b16 %v201
      %v249 = vunpack.c.l.b16 %v202
      %v250 = vunpack.c.h.b16 %v202
      %v251 = vunpack.c.l.b16 %v203
      %v252 = vunpack.c.h.b16 %v203
      %v253 = vpack.c.b16 %v245, %v243
      %v254 = vpack.c.b16 %v246, %v244
      %v255 = vpack.c.b16 %v249, %v247
      %v256 = vpack.c.b16 %v250, %v248
      %v257 = vpack.c.b16 %v251, %v251
      %v258 = vpack.c.b16 %v252, %v252
      %v297 = vunpack.c.l.b16 %v206
      %v298 = vunpack.c.l.b16 %v207
      %v299 = vunpack.c.l.b16 %v208
      %v300 = vunpack.c.l.b16 %v209
      %v301 = vunpack.c.l.b16 %v210
      %v302 = vunpack.c.l.b16 %v211
      %v303 = vunpack.c.l.b16 %v212
      %v304 = vunpack.c.l.b16 %v213
      %v305 = vunpack.c.l.b16 %v214
      %v306 = vunpack.c.l.b16 %v215
      %v307 = vunpack.c.l.b16 %v216
      %v308 = vunpack.c.l.b16 %v217
      %v309 = vunpack.c.l.b16 %v218
      %v310 = vunpack.c.l.b16 %v219
      %v311 = vunpack.c.l.b16 %v220
      %v312 = vunpack.c.l.b16 %v221
      %v313 = vunpack.c.l.b16 %v222
      %v314 = vunpack.c.l.b16 %v223
      %v315 = vunpack.c.l.b16 %v224
      %v316 = vunpack.c.l.b16 %v225
      %v317 = vunpack.c.l.b16 %v226
      %v318 = vunpack.c.l.b16 %v227
      %v319 = vunpack.c.l.b16 %v228
      %v320 = vunpack.c.l.b16 %v229
      %v321 = vunpack.c.l.b16 %v230
      %v322 = vunpack.c.l.b16 %v231
      %v323 = vunpack.c.l.b16 %v232
      %v324 = vunpack.c.l.b16 %v233
      %v325 = vunpack.c.l.b16 %v234
      %v326 = vunpack.c.l.b16 %v235
      %v327 = vunpack.c.l.b16 %v236
      %v328 = vunpack.c.l.b16 %v237
      %v329 = vpack.c.b16 %v298, %v297
      %v330 = vpack.c.b16 %v300, %v299
      %v331 = vpack.c.b16 %v302, %v301
      %v332 = vpack.c.b16 %v304, %v303
      %v333 = vpack.c.b16 %v306, %v305
      %v334 = vpack.c.b16 %v308, %v307
      %v335 = vpack.c.b16 %v310, %v309
      %v336 = vpack.c.b16 %v312, %v311
      %v337 = vpack.c.b16 %v314, %v313
      %v338 = vpack.c.b16 %v316, %v315
      %v339 = vpack.c.b16 %v318, %v317
      %v340 = vpack.c.b16 %v320, %v319
      %v341 = vpack.c.b16 %v322, %v321
      %v342 = vpack.c.b16 %v324, %v323
      %v343 = vpack.c.b16 %v326, %v325
      %v344 = vpack.c.b16 %v328, %v327
      %361 = vmatprep.subr.bf16.mxu0 0
      %362 = vmatpush1.bf16.msra.mxu0 %v336
      %363 = vmatprep.subr.bf16.mxu0 0
      %364 = vmatpush1.bf16.msra.mxu0 %v335
      %365 = vmatprep.subr.bf16.mxu0 0
      %366 = vmatpush1.bf16.msra.mxu0 %v334
      %367 = vmatprep.subr.bf16.mxu0 0
      %368 = vmatpush1.bf16.msra.mxu0 %v333
      %369 = vmatprep.subr.bf16.mxu0 0
      %370 = vmatpush1.bf16.msra.mxu0 %v332
      %371 = vmatprep.subr.bf16.mxu0 0
      %372 = vmatpush1.bf16.msra.mxu0 %v331
      %373 = vmatprep.subr.bf16.mxu0 0
      %374 = vmatpush1.bf16.msra.mxu0 %v330
      %375 = vmatprep.subr.bf16.mxu0 0
      %376 = vmatpush1.bf16.msra.mxu0 %v329
      %377 = vmatprep.subr.bf16.mxu0 0
      %378 = vmatpush2.bf16.msra.mxu0 %v344
      %379 = vmatprep.subr.bf16.mxu0 0
      %380 = vmatpush2.bf16.msra.mxu0 %v343
      %381 = vmatprep.subr.bf16.mxu0 0
      %382 = vmatpush2.bf16.msra.mxu0 %v342
      %383 = vmatprep.subr.bf16.mxu0 0
      %384 = vmatpush2.bf16.msra.mxu0 %v341
      %385 = vmatprep.subr.bf16.mxu0 0
      %386 = vmatpush2.bf16.msra.mxu0 %v340
      %387 = vmatprep.subr.bf16.mxu0 0
      %388 = vmatpush2.bf16.msra.mxu0 %v339
      %389 = vmatprep.subr.bf16.mxu0 0
      %390 = vmatpush2.bf16.msra.mxu0 %v338
      %391 = vmatprep.subr.bf16.mxu0 0
      %392 = vmatpush2.bf16.msra.mxu0 %v337
      %393 = vmatprep.mubr.bf16.mxu0 %v254
      %394 = vmatmul.mubr.bf16.gmra.mxu0 %v253
      %v395 = vpop.f32.mrf.mxu0
      %v396 = vadd.f32 0.0, %v395
      %v397 = vpop.f32.mrf.mxu0
      %v398 = vpop.f32.mrf.mxu0
      %v399 = vadd.f32 0.0, %v398
      %v400 = vpop.f32.mrf.mxu0
      %401 = vmatprep.mubr.bf16.mxu0 %v256
      %402 = vmatmul.mubr.bf16.gmra.mxu0 %v255
      %v403 = vpop.f32.mrf.mxu0
      %v404 = vadd.f32 0.0, %v403
      %v405 = vpop.f32.mrf.mxu0
      %v406 = vpop.f32.mrf.mxu0
      %v407 = vadd.f32 0.0, %v406
      %v408 = vpop.f32.mrf.mxu0
      %409 = vmatprep.mubr.bf16.mxu0 %v258
      %410 = vmatmul.mubr.bf16.gmra.mxu0 %v257
      %v411 = vpop.f32.mrf.mxu0
      %v412 = vadd.f32 0.0, %v411
      %v413 = vpop.f32.mrf.mxu0
      %v414 = vpop.f32.mrf.mxu0
      %v415 = vpop.f32.mrf.mxu0
      %416 = vdwg.mxu0
      %v417 = vpack.c.bf16 %v399, %v396
      %v418 = vpack.c.bf16 %v407, %v404
      %v419 = vpack.c.bf16 %v412, %v412
      %v421 = vlaneseq
      %v422 = vshrl.u32 %v421, 7
      %v423 = vsub.s32 0, %v422
      %v424 = vrot.slane %v205, %v423
      %vm426 = vcmask 64512
      %v428 = vsel %vm426, %v417, 0
      %v431 = vsel %vm426, %v418, 0
      %v434 = vsel %vm426, %v419, 0
      %vm436 = vcmask 1043456
      %v438 = vsel %vm436, %v204, 0
      %440 = vmatprep.subr.bf16.mxu0 0
      %441 = vmatpush1.bf16.msra.mxu0 0
      %442 = vmatprep.subr.bf16.mxu0 0
      %443 = vmatpush1.bf16.msra.mxu0 0
      %444 = vmatprep.subr.bf16.mxu0 0
      %445 = vmatpush1.bf16.msra.mxu0 0
      %446 = vmatprep.subr.bf16.mxu0 0
      %447 = vmatpush1.bf16.msra.mxu0 0
      %448 = vmatprep.subr.bf16.mxu0 0
      %449 = vmatpush1.bf16.msra.mxu0 0
      %450 = vmatprep.subr.bf16.mxu0 0
      %451 = vmatpush1.bf16.msra.mxu0 0
      %452 = vmatprep.subr.bf16.mxu0 0
      %453 = vmatpush1.bf16.msra.mxu0 0
      %454 = vmatprep.subr.bf16.mxu0 0
      %455 = vmatpush1.bf16.msra.mxu0 %v438
      %456 = vmatprep.subr.bf16.mxu0 0
      %457 = vmatpush2.bf16.msra.mxu0 0
      %458 = vmatprep.subr.bf16.mxu0 0
      %459 = vmatpush2.bf16.msra.mxu0 0
      %460 = vmatprep.subr.bf16.mxu0 0
      %461 = vmatpush2.bf16.msra.mxu0 0
      %462 = vmatprep.subr.bf16.mxu0 0
      %463 = vmatpush2.bf16.msra.mxu0 0
      %464 = vmatprep.subr.bf16.mxu0 0
      %465 = vmatpush2.bf16.msra.mxu0 0
      %466 = vmatprep.subr.bf16.mxu0 0
      %467 = vmatpush2.bf16.msra.mxu0 0
      %468 = vmatprep.subr.bf16.mxu0 0
      %469 = vmatpush2.bf16.msra.mxu0 0
      %470 = vmatprep.subr.bf16.mxu0 0
      %471 = vmatpush2.bf16.msra.mxu0 0
      %472 = vmatprep.mubr.bf16.mxu0 0
      %473 = vmatmul.mubr.bf16.gmra.mxu0 %v428
      %v474 = vpop.f32.mrf.mxu0
      %v475 = vadd.f32 %v424, %v474
      %v476 = vpop.f32.mrf.mxu0
      %v477 = vpop.f32.mrf.mxu0
      %v478 = vadd.f32 %v424, %v477
      %v479 = vpop.f32.mrf.mxu0
      %480 = vmatprep.mubr.bf16.mxu0 0
      %481 = vmatmul.mubr.bf16.gmra.mxu0 %v431
      %v482 = vpop.f32.mrf.mxu0
      %v483 = vadd.f32 %v424, %v482
      %v484 = vpop.f32.mrf.mxu0
      %v485 = vpop.f32.mrf.mxu0
      %v486 = vadd.f32 %v424, %v485
      %v487 = vpop.f32.mrf.mxu0
      %488 = vmatprep.mubr.bf16.mxu0 0
      %489 = vmatmul.mubr.bf16.gmra.mxu0 %v434
      %v490 = vpop.f32.mrf.mxu0
      %v491 = vadd.f32 %v424, %v490
      %v492 = vpop.f32.mrf.mxu0
      %v493 = vpop.f32.mrf.mxu0
      %v494 = vpop.f32.mrf.mxu0
      %495 = vdwg.mxu0
      %vm496 = vcmask 261120
      %497 = vst.msk [vmem:[%s197] sm:$0xff] %vm496, %v475
      %498 = vst.msk [vmem:[%s197 + $0x8] sm:$0xff] %vm496, %v478
      %499 = vst.msk [vmem:[%s197 + $0x10] sm:$0xff] %vm496, %v483
      %500 = vst.msk [vmem:[%s197 + $0x18] sm:$0xff] %vm496, %v486
      %vm501 = vcmask 256000
      %502 = vst.msk [vmem:[%s197 + $0x20] sm:$0x7] %vm501, %v491
      %p503 = scmp.lt.s32.totalorder %s15, 1
      %s504 = scalar_select %p503, %s15, 1
      %s505 = smul.addr %s504, 5
      %s506 = smul.addr %s505, 8
      %s507 = scalar_lea.vmem %s4, %s506
      // Predicated region
      $region37: #{tpu_custom_call.1} parent=35 // pred_check
        %p508 = pneg %p122
      $region38: #{tpu_custom_call.1} parent=35 // pred_check_branch
        %510 = sbr.rel (%p508) target = $region40
      $region39: #{tpu_custom_call.1} parent=35 // pred_region
        _
      $region40: #{tpu_custom_call.1} parent=35 // pred_fallthru
        _
    $region36: #{tpu_custom_call.1} parent=5 // pred_fallthru
      _
    %p511 = scmp.le.s32.totalorder 2, %s10
    // Predicated region
    $region41: #{tpu_custom_call.1} parent=5 // pred_check
      %p512 = pneg %p511
    $region42: #{tpu_custom_call.1} parent=5 // pred_check_branch
      %514 = sbr.rel (%p512) target = $region44
    $region43: #{tpu_custom_call.1} parent=5 // pred_region
      %s515 = ssub.s32 %s10, 2
      // Predicated region
      $region45: #{tpu_custom_call.1} parent=43 // pred_check
        %p516 = pneg %p128
      $region46: #{tpu_custom_call.1} parent=43 // pred_check_branch
        %518 = sbr.rel (%p516) target = $region48
      $region47: #{tpu_custom_call.1} parent=43 // pred_region
        %p519 = scmp.lt.s32.totalorder %s16, 1
        %s520 = scalar_select %p519, %s16, 1
        %s521 = smul.addr %s520, 5
        %s522 = smul.addr %s521, 8
        %s523 = scalar_lea.vmem %s4, %s522
      $region48: #{tpu_custom_call.1} parent=43 // pred_fallthru
        _
    $region44: #{tpu_custom_call.1} parent=5 // pred_fallthru
      _
  $region6: #{tpu_custom_call.1} parent=0 // loop_footer
    %s14 = sadd.s32 1, %s10
  $region7: #{tpu_custom_call.1} parent=0 // loop_footer_branch
    %9 = sbr.rel target = $region3
  $region8: #{tpu_custom_call.1} parent=0 // loop_exit
    _

</llo_original>
